<compile_context>
chip_gen: v7x
topology: tpu7x:2x2x1
jax: 0.10.0
libtpu: 0.0.40
codegen_flags: <defaults>
</compile_context>

<pallas_src>
import jax
import jax.numpy as jnp
from jax.experimental import pallas as pl
from jax.experimental.pallas import tpu as pltpu


# --------------------------------------------------------------------------------------
# Helpers: generation-aware VMEM budget and vocab tile selection
# --------------------------------------------------------------------------------------
def _round_up(x, m):
    return ((x + m - 1) // m) * m


def _vmem_budget_bytes():
    """VMEM budget with headroom (v7x: 64 MiB physical, v5e/v6e: 128 MiB)."""
    try:
        cap = int(pltpu.get_tpu_info().vmem_capacity_bytes)
    except Exception:
        cap = 64 << 20  # conservative (v7x-sized) fallback
    return int(min(cap * 3 // 4, 96 << 20))


def _pick_vocab_tile(V, D, B, out_itemsize, budget):
    """Vocab tile ~2 MiB of streamed table, clamped to the VMEM budget, with >=2
    (preferably even) tiles so v7x's two TensorCores stay load-balanced."""
    if V <= 256:  # tiny vocab: single full-extent block
        return V, 1

    d_vmem = _round_up(D, 128)   # lane padding of the VMEM emb buffer
    b_vmem = _round_up(B, 16)    # sublane padding (bf16)

    def vmem_need(t):
        n_emb_buf = 3 if pl.cdiv(V, t) > 2 else 2
        emb = n_emb_buf * t * d_vmem * 2                          # bf16 table buffers
        out = 2 * b_vmem * _round_up(t, 128) * out_itemsize       # double-buffered logits
        resident = 8 * b_vmem * d_vmem * 4                        # x slabs, fc_w, LN params
        return emb + out + resident

    target = (2 << 20) // (2 * D)                                 # ~2 MiB per emb tile
    tv = min(_round_up(max(target, 128), 128), _round_up(V, 128))
    while vmem_need(tv) > budget and tv > 128:
        tv = max(128, _round_up(tv // 2, 128))

    nt = pl.cdiv(V, tv)
    if nt == 1 and V > 128:                                       # >=2 tiles for v7x megacore
        tv = max(128, _round_up(pl.cdiv(V, 2), 128))
        nt = pl.cdiv(V, tv)
    if nt > 1 and nt % 2 == 1:                                    # prefer an even tile count
        tv_even = max(128, _round_up(pl.cdiv(V, nt + 1), 128))
        if pl.cdiv(V, tv_even) % 2 == 0 and vmem_need(tv_even) <= budget:
            tv = tv_even
            nt = pl.cdiv(V, tv)
    return tv, nt


# --------------------------------------------------------------------------------------
# Fused kernel:  out = LayerNorm(sum_f x_f @ W[f*D:(f+1)*D, :] + b)   (B, D)
#                o_tile = out @ emb_tile.T                            (B, tv) per grid step
# --------------------------------------------------------------------------------------
def _make_moca_kernel(num_srcs, dim):
    def kernel(*refs):
        x_refs = refs[:num_srcs]
        w_ref, b_ref, g_ref, beta_ref, emb_ref, o_ref = refs[num_srcs:]

        # ---- Linear(F*D -> D) + LayerNorm on the last-position slab, f32 accumulation.
        # Recomputed every vocab tile (cheap; hides under the table DMA) so it stays
        # correct when the 'parallel' vocab axis is sharded across TensorCores.
        acc = jnp.zeros((x_refs[0].shape[0], dim), jnp.float32)
        for f in range(num_srcs):
            acc = acc + jnp.dot(
                x_refs[f][...],
                w_ref[pl.ds(f * dim, dim), :],
                preferred_element_type=jnp.float32,
            )
        y = acc + b_ref[...]                                      # (B, D) f32
        inv_d = 1.0 / dim
        mu = jnp.sum(y, axis=-1, keepdims=True) * inv_d
        ey2 = jnp.sum(y * y, axis=-1, keepdims=True) * inv_d
        var = ey2 - mu * mu
        yhat = (y - mu) * jax.lax.rsqrt(var + 1e-5)               # nn.LayerNorm default eps
        out = (yhat * g_ref[...] + beta_ref[...]).astype(jnp.bfloat16)   # (B, D)

        # ---- logits tile: contract on D against row-blocked id_emb (no transpose copy).
        o_ref[...] = jax.lax.dot_general(
            out, emb_ref[...],
            dimension_numbers=(((1,), (1,)), ((), ())),
            preferred_element_type=jnp.float32,
        ).astype(o_ref.dtype)

    return kernel


def moca_logits_pallas(x_list, fc_w, fc_b, ln_g, ln_b, id_emb):
    num_srcs = len(x_list)
    B, D = x_list[0].shape
    K = fc_w.shape[0]
    V = id_emb.shape[0]
    assert K == num_srcs * D

    out_dtype = jnp.bfloat16
    out_itemsize = jnp.dtype(out_dtype).itemsize
    budget = _vmem_budget_bytes()
    tv, num_tiles = _pick_vocab_tile(V, D, B, out_itemsize, budget)

    emb_kwargs = {"pipeline_mode": pl.Buffered(3)} if num_tiles > 2 else {}

    in_specs = (
        [pl.BlockSpec((B, D), lambda j: (0, 0)) for _ in range(num_srcs)]
        + [
            pl.BlockSpec((K, D), lambda j: (0, 0)),
            pl.BlockSpec((1, D), lambda j: (0, 0)),
            pl.BlockSpec((1, D), lambda j: (0, 0)),
            pl.BlockSpec((1, D), lambda j: (0, 0)),
            pl.BlockSpec((tv, D), lambda j: (j, 0), **emb_kwargs),
        ]
    )

    cost = pl.CostEstimate(
        flops=int(2 * B * V * D + num_tiles * 2 * B * K * D),
        transcendentals=int(num_tiles * B),
        bytes_accessed=int(
            V * D * 2 + B * V * out_itemsize + K * D * 2 + num_srcs * B * D * 2 + 3 * D * 4
        ),
    )

    return pl.pallas_call(
        _make_moca_kernel(num_srcs, D),
        out_shape=jax.ShapeDtypeStruct((B, V), out_dtype),
        grid=(num_tiles,),
        in_specs=in_specs,
        out_specs=pl.BlockSpec((B, tv), lambda j: (0, j)),
        compiler_params=pltpu.CompilerParams(
            dimension_semantics=("parallel",),
            vmem_limit_bytes=int(budget),
        ),
        cost_estimate=cost,
    )(*x_list, fc_w, fc_b.reshape(1, D), ln_g.reshape(1, D), ln_b.reshape(1, D), id_emb)


# --------------------------------------------------------------------------------------
# MOCA forward (glue: last-position embedding gathers; hot path: one fused Pallas kernel)
# --------------------------------------------------------------------------------------
def moca_forward(params, seq, feats):
    # Both transformers are Identity and only out[:, -1, :] feeds the logits, so only the
    # last sequence position is gathered / transformed (maxlen-fold less work).
    last_ids = seq[:, -1]                                                  # (B,)
    x_list = [jnp.take(w, f[:, -1], axis=0) for w, f in zip(params["feat_embs"], feats)]
    x_list.append(jnp.take(params["id_emb"], last_ids, axis=0))            # features..., id
    return moca_logits_pallas(
        x_list, params["fc_w"], params["fc_b"], params["ln_g"], params["ln_b"],
        params["id_emb"],
    )                                                                      # (B, V) bf16


# --------------------------------------------------------------------------------------
# Deterministic parameter init + example run
# --------------------------------------------------------------------------------------
def init_params(key, dim, feature_dims, num_items):
    num_feats = len(feature_dims) + 1
    ks = jax.random.split(key, 5 + len(feature_dims))

    id_emb = 0.02 * jax.random.normal(ks[0], (num_items + 1, dim), jnp.float32)
    id_emb = id_emb.at[0].set(0.0)                          # padding_idx=0

    feat_embs = []
    for j, f_dim in enumerate(feature_dims):
        w = 0.02 * jax.random.normal(ks[1 + j], (f_dim + 1, dim), jnp.float32)
        feat_embs.append(w.at[0].set(0.0).astype(jnp.bfloat16))   # padding_idx=0

    base = 1 + len(feature_dims)
    # fc_w stored transposed relative to nn.Linear.weight: (F*D, D), y = x @ fc_w + fc_b
    fc_w = 0.02 * jax.random.normal(ks[base + 0], (num_feats * dim, dim), jnp.float32)
    fc_b = 0.02 * jax.random.normal(ks[base + 1], (dim,), jnp.float32)
    ln_g = 1.0 + 0.02 * jax.random.normal(ks[base + 2], (dim,), jnp.float32)
    ln_b = 0.02 * jax.random.normal(ks[base + 3], (dim,), jnp.float32)

    return {
        "id_emb": id_emb.astype(jnp.bfloat16),   # bf16 operands: half the HBM stream
        "feat_embs": feat_embs,
        "fc_w": fc_w.astype(jnp.bfloat16),
        "fc_b": fc_b,                            # bias / LN params stay f32
        "ln_g": ln_g,
        "ln_b": ln_b,
    }


def _ref_forward(params, seq, feats):
    """Pure-JAX f32 reference of the same math (for a tolerance check)."""
    cols = [jnp.take(w.astype(jnp.float32), f[:, -1], axis=0)
            for w, f in zip(params["feat_embs"], feats)]
    cols.append(jnp.take(params["id_emb"].astype(jnp.float32), seq[:, -1], axis=0))
    x = jnp.concatenate(cols, axis=-1)
    y = x @ params["fc_w"].astype(jnp.float32) + params["fc_b"]
    mu = y.mean(-1, keepdims=True)
    var = ((y - mu) ** 2).mean(-1, keepdims=True)
    out = (y - mu) * jax.lax.rsqrt(var + 1e-5) * params["ln_g"] + params["ln_b"]
    return out @ params["id_emb"].astype(jnp.float32).T


if __name__ == "__main__":
    # Small config consistent with the module's __init__
    dim = 32
    feature_dims = [5, 7]          # two categorical features -> num_feats = 3
    num_items = 50
    maxlen = 8
    B, N = 2, maxlen

    key = jax.random.PRNGKey(0)
    kp, ks, kf0, kf1 = jax.random.split(key, 4)

    params = init_params(kp, dim, feature_dims, num_items)

    seq = jax.random.randint(ks, (B, N), 1, num_items + 1, dtype=jnp.int32)
    seq = seq.at[0, 0].set(0)  # a padding position (mask path, unused with 'none' transformers)
    feat0 = jax.random.randint(kf0, (B, N), 1, feature_dims[0] + 1, dtype=jnp.int32)
    feat1 = jax.random.randint(kf1, (B, N), 1, feature_dims[1] + 1, dtype=jnp.int32)

    fwd = jax.jit(moca_forward)
    logits = fwd(params, seq, [feat0, feat1])
    logits = jax.block_until_ready(logits)

    assert logits.shape == (B, num_items + 1), logits.shape
    assert bool(jnp.all(jnp.isfinite(logits.astype(jnp.float32))))

    ref = _ref_forward(params, seq, [feat0, feat1])
    max_err = float(jnp.max(jnp.abs(logits.astype(jnp.float32) - ref)))
    assert max_err < 5e-2, f"max abs err vs reference: {max_err}"

    print("KERNEL_OK")
</pallas_src>

<mosaic_0001>
module attributes {stable_mosaic.version = 11 : i64} {
  func.func @kernel(%arg0: i32, %arg1: memref<2x32xbf16, #tpu.memory_space<vmem>>, %arg2: memref<2x32xbf16, #tpu.memory_space<vmem>>, %arg3: memref<2x32xbf16, #tpu.memory_space<vmem>>, %arg4: memref<96x32xbf16, #tpu.memory_space<vmem>>, %arg5: memref<1x32xf32, #tpu.memory_space<vmem>>, %arg6: memref<1x32xf32, #tpu.memory_space<vmem>>, %arg7: memref<1x32xf32, #tpu.memory_space<vmem>>, %arg8: memref<51x32xbf16, #tpu.memory_space<vmem>>, %arg9: memref<2x51xbf16, #tpu.memory_space<vmem>>) attributes {dimension_semantics = [#tpu.dimension_semantics<parallel>], iteration_bounds = array<i64: 1>, scalar_prefetch = 0 : i64, scratch_operands = 0 : i64, tpu.core_type = #tpu.core_type<tc>, window_params = [{pipeline_mode = #tpu.pipeline_mode<synchronous>, transform_indices = @transform_0, window_bounds = array<i64: 2, 32>}, {pipeline_mode = #tpu.pipeline_mode<synchronous>, transform_indices = @transform_1, window_bounds = array<i64: 2, 32>}, {pipeline_mode = #tpu.pipeline_mode<synchronous>, transform_indices = @transform_2, window_bounds = array<i64: 2, 32>}, {pipeline_mode = #tpu.pipeline_mode<synchronous>, transform_indices = @transform_3, window_bounds = array<i64: 96, 32>}, {pipeline_mode = #tpu.pipeline_mode<synchronous>, transform_indices = @transform_4, window_bounds = array<i64: 1, 32>}, {pipeline_mode = #tpu.pipeline_mode<synchronous>, transform_indices = @transform_5, window_bounds = array<i64: 1, 32>}, {pipeline_mode = #tpu.pipeline_mode<synchronous>, transform_indices = @transform_6, window_bounds = array<i64: 1, 32>}, {transform_indices = @transform_7, window_bounds = array<i64: 51, 32>}, {transform_indices = @transform_8, window_bounds = array<i64: 2, 51>}]} {
    %cst = arith.constant 0.000000e+00 : f32
    %0 = vector.broadcast %cst : f32 to vector<2x32xf32>
    %c0 = arith.constant 0 : index
    %c0_0 = arith.constant 0 : index
    %1 = vector.load %arg1[%c0, %c0_0] : memref<2x32xbf16, #tpu.memory_space<vmem>>, vector<2x32xbf16>
    %c0_1 = arith.constant 0 : index
    %c0_2 = arith.constant 0 : index
    %2 = vector.load %arg4[%c0_1, %c0_2] : memref<96x32xbf16, #tpu.memory_space<vmem>>, vector<32x32xbf16>
    %cst_3 = arith.constant dense<0.000000e+00> : vector<2x32xf32>
    %3 = tpu.matmul %1, %2, %cst_3 {dimension_numbers = #tpu.dot_dimension_numbers<[1], [0], [0], [1], [0, 0, 1, 1], [], []>} : vector<2x32xbf16>, vector<32x32xbf16>, vector<2x32xf32> -> vector<2x32xf32>
    %4 = arith.addf %0, %3 : vector<2x32xf32>
    %c0_4 = arith.constant 0 : index
    %c0_5 = arith.constant 0 : index
    %5 = vector.load %arg2[%c0_4, %c0_5] : memref<2x32xbf16, #tpu.memory_space<vmem>>, vector<2x32xbf16>
    %c32 = arith.constant 32 : index
    %c0_6 = arith.constant 0 : index
    %6 = vector.load %arg4[%c32, %c0_6] : memref<96x32xbf16, #tpu.memory_space<vmem>>, vector<32x32xbf16>
    %cst_7 = arith.constant dense<0.000000e+00> : vector<2x32xf32>
    %7 = tpu.matmul %5, %6, %cst_7 {dimension_numbers = #tpu.dot_dimension_numbers<[1], [0], [0], [1], [0, 0, 1, 1], [], []>} : vector<2x32xbf16>, vector<32x32xbf16>, vector<2x32xf32> -> vector<2x32xf32>
    %8 = arith.addf %4, %7 : vector<2x32xf32>
    %c0_8 = arith.constant 0 : index
    %c0_9 = arith.constant 0 : index
    %9 = vector.load %arg3[%c0_8, %c0_9] : memref<2x32xbf16, #tpu.memory_space<vmem>>, vector<2x32xbf16>
    %c64 = arith.constant 64 : index
    %c0_10 = arith.constant 0 : index
    %10 = vector.load %arg4[%c64, %c0_10] : memref<96x32xbf16, #tpu.memory_space<vmem>>, vector<32x32xbf16>
    %cst_11 = arith.constant dense<0.000000e+00> : vector<2x32xf32>
    %11 = tpu.matmul %9, %10, %cst_11 {dimension_numbers = #tpu.dot_dimension_numbers<[1], [0], [0], [1], [0, 0, 1, 1], [], []>} : vector<2x32xbf16>, vector<32x32xbf16>, vector<2x32xf32> -> vector<2x32xf32>
    %12 = arith.addf %8, %11 : vector<2x32xf32>
    %c0_12 = arith.constant 0 : index
    %c0_13 = arith.constant 0 : index
    %13 = vector.load %arg5[%c0_12, %c0_13] : memref<1x32xf32, #tpu.memory_space<vmem>>, vector<1x32xf32>
    %14 = vector.broadcast %13 : vector<1x32xf32> to vector<2x32xf32>
    %15 = arith.addf %12, %14 : vector<2x32xf32>
    %cst_14 = arith.constant dense<0.000000e+00> : vector<2xf32>
    %16 = vector.multi_reduction <add>, %15, %cst_14 [1] : vector<2x32xf32> to vector<2xf32>
    %17 = vector.shape_cast %16 : vector<2xf32> to vector<2x1xf32>
    %cst_15 = arith.constant 3.125000e-02 : f32
    %18 = vector.broadcast %cst_15 : f32 to vector<2x1xf32>
    %19 = arith.mulf %17, %18 : vector<2x1xf32>
    %20 = arith.mulf %15, %15 : vector<2x32xf32>
    %cst_16 = arith.constant dense<0.000000e+00> : vector<2xf32>
    %21 = vector.multi_reduction <add>, %20, %cst_16 [1] : vector<2x32xf32> to vector<2xf32>
    %22 = vector.shape_cast %21 : vector<2xf32> to vector<2x1xf32>
    %cst_17 = arith.constant 3.125000e-02 : f32
    %23 = vector.broadcast %cst_17 : f32 to vector<2x1xf32>
    %24 = arith.mulf %22, %23 : vector<2x1xf32>
    %25 = arith.mulf %19, %19 : vector<2x1xf32>
    %26 = arith.subf %24, %25 : vector<2x1xf32>
    %27 = vector.broadcast %19 : vector<2x1xf32> to vector<2x32xf32>
    %28 = arith.subf %15, %27 : vector<2x32xf32>
    %cst_18 = arith.constant 9.99999974E-6 : f32
    %29 = vector.broadcast %cst_18 : f32 to vector<2x1xf32>
    %30 = arith.addf %26, %29 : vector<2x1xf32>
    %31 = math.rsqrt %30 : vector<2x1xf32>
    %32 = vector.broadcast %31 : vector<2x1xf32> to vector<2x32xf32>
    %33 = arith.mulf %28, %32 : vector<2x32xf32>
    %c0_19 = arith.constant 0 : index
    %c0_20 = arith.constant 0 : index
    %34 = vector.load %arg6[%c0_19, %c0_20] : memref<1x32xf32, #tpu.memory_space<vmem>>, vector<1x32xf32>
    %35 = vector.broadcast %34 : vector<1x32xf32> to vector<2x32xf32>
    %36 = arith.mulf %33, %35 : vector<2x32xf32>
    %c0_21 = arith.constant 0 : index
    %c0_22 = arith.constant 0 : index
    %37 = vector.load %arg7[%c0_21, %c0_22] : memref<1x32xf32, #tpu.memory_space<vmem>>, vector<1x32xf32>
    %38 = vector.broadcast %37 : vector<1x32xf32> to vector<2x32xf32>
    %39 = arith.addf %36, %38 : vector<2x32xf32>
    %40 = arith.truncf %39 : vector<2x32xf32> to vector<2x32xbf16>
    %c0_23 = arith.constant 0 : index
    %c0_24 = arith.constant 0 : index
    %41 = vector.load %arg8[%c0_23, %c0_24] : memref<51x32xbf16, #tpu.memory_space<vmem>>, vector<51x32xbf16>
    %cst_25 = arith.constant dense<0.000000e+00> : vector<2x51xf32>
    %42 = tpu.matmul %40, %41, %cst_25 {dimension_numbers = #tpu.dot_dimension_numbers<[1], [1], [0], [0], [0, 0, 1, 0], [], []>} : vector<2x32xbf16>, vector<51x32xbf16>, vector<2x51xf32> -> vector<2x51xf32>
    %43 = arith.truncf %42 : vector<2x51xf32> to vector<2x51xbf16>
    %c0_26 = arith.constant 0 : index
    %c0_27 = arith.constant 0 : index
    %44 = vector.load %arg9[%c0_26, %c0_27] : memref<2x51xbf16, #tpu.memory_space<vmem>>, vector<2x51xbf16>
    tpu.vector_store %arg9[%c0_26, %c0_27], %43 {strides = array<i32>} : memref<2x51xbf16, #tpu.memory_space<vmem>>, vector<2x51xbf16>,
    return
  }
  func.func @transform_0(%arg0: i32) -> (i32, i32) {
    %c0_i32 = arith.constant 0 : i32
    %c0_i32_0 = arith.constant 0 : i32
    %c0_i32_1 = arith.constant 0 : i32
    return %c0_i32, %c0_i32_0 : i32, i32
  }
  func.func @transform_1(%arg0: i32) -> (i32, i32) {
    %c0_i32 = arith.constant 0 : i32
    %c0_i32_0 = arith.constant 0 : i32
    %c0_i32_1 = arith.constant 0 : i32
    return %c0_i32, %c0_i32_0 : i32, i32
  }
  func.func @transform_2(%arg0: i32) -> (i32, i32) {
    %c0_i32 = arith.constant 0 : i32
    %c0_i32_0 = arith.constant 0 : i32
    %c0_i32_1 = arith.constant 0 : i32
    return %c0_i32, %c0_i32_0 : i32, i32
  }
  func.func @transform_3(%arg0: i32) -> (i32, i32) {
    %c0_i32 = arith.constant 0 : i32
    %c0_i32_0 = arith.constant 0 : i32
    %c0_i32_1 = arith.constant 0 : i32
    return %c0_i32, %c0_i32_0 : i32, i32
  }
  func.func @transform_4(%arg0: i32) -> (i32, i32) {
    %c0_i32 = arith.constant 0 : i32
    %c0_i32_0 = arith.constant 0 : i32
    %c0_i32_1 = arith.constant 0 : i32
    return %c0_i32, %c0_i32_0 : i32, i32
  }
  func.func @transform_5(%arg0: i32) -> (i32, i32) {
    %c0_i32 = arith.constant 0 : i32
    %c0_i32_0 = arith.constant 0 : i32
    %c0_i32_1 = arith.constant 0 : i32
    return %c0_i32, %c0_i32_0 : i32, i32
  }
  func.func @transform_6(%arg0: i32) -> (i32, i32) {
    %c0_i32 = arith.constant 0 : i32
    %c0_i32_0 = arith.constant 0 : i32
    %c0_i32_1 = arith.constant 0 : i32
    return %c0_i32, %c0_i32_0 : i32, i32
  }
  func.func @transform_7(%arg0: i32) -> (i32, i32) {
    %c0_i32 = arith.constant 0 : i32
    %c0_i32_0 = arith.constant 0 : i32
    return %arg0, %c0_i32 : i32, i32
  }
  func.func @transform_8(%arg0: i32) -> (i32, i32) {
    %c0_i32 = arith.constant 0 : i32
    %c0_i32_0 = arith.constant 0 : i32
    return %c0_i32, %arg0 : i32, i32
  }
}

</mosaic_0001>

<llo_original>
// kernel: moca_forward.1
$region0: #{moca_forward.1}
  #allocation0 [shape = 'u32[]', space=smem, size = 0x4, offset = 0x4, fixed_abs, tag = 'smem constant byte address 0x4 - core index']
  #allocation1 [shape = 'u32[144,128]{1,0:T(1,128)}', space=vmem, size = 0x12000, scoped, tag = 'internal scratch']
  %s0 = inlined_call_operand.vmem [shape: bf16[2,32], index: 0, kind: input, shape index: {}]
  %s1 = inlined_call_operand.vmem [shape: bf16[2,32], index: 1, kind: input, shape index: {}]
  %s2 = inlined_call_operand.vmem [shape: bf16[2,32], index: 2, kind: input, shape index: {}]
  %s3 = inlined_call_operand.vmem [shape: bf16[96,32], index: 3, kind: input, shape index: {}]
  %s4 = inlined_call_operand.vmem [shape: f32[1,32], index: 4, kind: input, shape index: {}]
  %s5 = inlined_call_operand.vmem [shape: f32[1,32], index: 5, kind: input, shape index: {}]
  %s6 = inlined_call_operand.vmem [shape: f32[1,32], index: 6, kind: input, shape index: {}]
  %s7 = inlined_call_operand.vmem [shape: bf16[51,32], index: 7, kind: input, shape index: {}]
  %s8 = inlined_call_operand.hbm [shape: bf16[2,51], index: 8, kind: output, shape index: {}]
  %s9 = sld [smem:[#allocation0]]
  $region42: #{moca_forward.1} parent=0
    _
  %s11 = ssub.s32 1, %s9
  %s12 = scalar_select 0, %s11, %s9
  $region1: #{moca_forward.1} parent=0
    #allocation2 [shape = 'u8[512]{0}', space=vmem, size = 0x400, scoped, tag = 'output window, operand 0, single buffered']
    #allocation3 [shape = 's32[1]{0}', space=sflag, size = 0x4, scoped, tag = 'scoped memory for moca_forward.1']
    %13 = vsyncpa [#allocation3], 0
    // Predicated region
    $region2: #{moca_forward.1} parent=1 // pred_check
      _
    $region3: #{moca_forward.1} parent=1 // pred_check_branch
      %15 = sbr.rel (0) target = $region5
    $region4: #{moca_forward.1} parent=1 // pred_region
      _
    $region5: #{moca_forward.1} parent=1 // pred_fallthru
      _
    // Predicated region
    $region6: #{moca_forward.1} parent=1 // pred_check
      _
    $region7: #{moca_forward.1} parent=1 // pred_check_branch
      %17 = sbr.rel (0) target = $region9
    $region8: #{moca_forward.1} parent=1 // pred_region
      _
    $region9: #{moca_forward.1} parent=1 // pred_fallthru
      _
    // Predicated region
    $region10: #{moca_forward.1} parent=1 // pred_check
      _
    $region11: #{moca_forward.1} parent=1 // pred_check_branch
      %19 = sbr.rel (0) target = $region13
    $region12: #{moca_forward.1} parent=1 // pred_region
      _
    $region13: #{moca_forward.1} parent=1 // pred_fallthru
      _
    // Predicated region
    $region14: #{moca_forward.1} parent=1 // pred_check
      _
    $region15: #{moca_forward.1} parent=1 // pred_check_branch
      %21 = sbr.rel (0) target = $region17
    $region16: #{moca_forward.1} parent=1 // pred_region
      _
    $region17: #{moca_forward.1} parent=1 // pred_fallthru
      _
    // Predicated region
    $region18: #{moca_forward.1} parent=1 // pred_check
      _
    $region19: #{moca_forward.1} parent=1 // pred_check_branch
      %23 = sbr.rel (0) target = $region21
    $region20: #{moca_forward.1} parent=1 // pred_region
      _
    $region21: #{moca_forward.1} parent=1 // pred_fallthru
      _
    // Predicated region
    $region22: #{moca_forward.1} parent=1 // pred_check
      _
    $region23: #{moca_forward.1} parent=1 // pred_check_branch
      %25 = sbr.rel (0) target = $region25
    $region24: #{moca_forward.1} parent=1 // pred_region
      _
    $region25: #{moca_forward.1} parent=1 // pred_fallthru
      _
    // Predicated region
    $region26: #{moca_forward.1} parent=1 // pred_check
      _
    $region27: #{moca_forward.1} parent=1 // pred_check_branch
      %27 = sbr.rel (0) target = $region29
    $region28: #{moca_forward.1} parent=1 // pred_region
      _
    $region29: #{moca_forward.1} parent=1 // pred_fallthru
      _
    // Predicated region
    $region30: #{moca_forward.1} parent=1 // pred_check
      _
    $region31: #{moca_forward.1} parent=1 // pred_check_branch
      %29 = sbr.rel (0) target = $region33
    $region32: #{moca_forward.1} parent=1 // pred_region
      _
    $region33: #{moca_forward.1} parent=1 // pred_fallthru
      _
    %v31 = vld [vmem:[%s0] sm:$0x1]
    %v32 = vld [vmem:[%s3] sm:$0xf]
    %v33 = vld [vmem:[%s3 + $0x4] sm:$0xf]
    %v34 = vld [vmem:[%s3 + $0x8] sm:$0xf]
    %v35 = vld [vmem:[%s3 + $0xc] sm:$0xf]
    %v36 = vld [vmem:[%s1] sm:$0x1]
    %v37 = vld [vmem:[%s3 + $0x10] sm:$0xf]
    %v38 = vld [vmem:[%s3 + $0x14] sm:$0xf]
    %v39 = vld [vmem:[%s3 + $0x18] sm:$0xf]
    %v40 = vld [vmem:[%s3 + $0x1c] sm:$0xf]
    %v45 = vunpack.c.l.b16 %v37
    %v46 = vunpack.c.l.b16 %v38
    %v47 = vunpack.c.l.b16 %v39
    %v48 = vunpack.c.l.b16 %v40
    %v49 = vpack.c.b16 %v46, %v45
    %v50 = vpack.c.b16 %v48, %v47
    %vm53 = vcmask 261120
    %v55 = vsel %vm53, %v36, 0
    %57 = vmatprep.subr.bf16.mxu0 0
    %58 = vmatpush1.bf16.msra.mxu0 %v49
    %59 = vmatprep.subr.bf16.mxu0 0
    %60 = vmatpush1.bf16.msra.mxu0 %v50
    %61 = vmatprep.subr.bf16.mxu0 0
    %62 = vmatpush1.bf16.msra.mxu0 0
    %63 = vmatprep.subr.bf16.mxu0 0
    %64 = vmatpush1.bf16.msra.mxu0 0
    %65 = vmatprep.subr.bf16.mxu0 0
    %66 = vmatpush1.bf16.msra.mxu0 0
    %67 = vmatprep.subr.bf16.mxu0 0
    %68 = vmatpush1.bf16.msra.mxu0 0
    %69 = vmatprep.subr.bf16.mxu0 0
    %70 = vmatpush1.bf16.msra.mxu0 0
    %71 = vmatprep.subr.bf16.mxu0 0
    %72 = vmatpush1.bf16.msra.mxu0 0
    %73 = vmatprep.subr.bf16.mxu0 0
    %74 = vmatpush1.bf16.msra.mxu0 0
    %75 = vmatprep.subr.bf16.mxu0 0
    %76 = vmatpush1.bf16.msra.mxu0 0
    %77 = vmatprep.subr.bf16.mxu0 0
    %78 = vmatpush1.bf16.msra.mxu0 0
    %79 = vmatprep.subr.bf16.mxu0 0
    %80 = vmatpush1.bf16.msra.mxu0 0
    %81 = vmatprep.subr.bf16.mxu0 0
    %82 = vmatpush1.bf16.msra.mxu0 0
    %83 = vmatprep.subr.bf16.mxu0 0
    %84 = vmatpush1.bf16.msra.mxu0 0
    %85 = vmatprep.subr.bf16.mxu0 0
    %86 = vmatpush1.bf16.msra.mxu0 0
    %87 = vmatprep.subr.bf16.mxu0 0
    %88 = vmatpush1.bf16.msra.mxu0 0
    %89 = vmatprep.mubr.bf16.mxu0 0
    %90 = vmatmul.mubr.bf16.gmra.mrb[0].mxu0 %v55
    %v91 = vpop.f32.mrb[0].mxu0
    %v92 = vadd.f32 0.0, %v91
    %v93 = vpop.f32.mrb[0].mxu0
    %v94 = vpop.f32.mrb[0].mxu0
    %v95 = vpop.f32.mrb[0].mxu0
    %96 = vdwg.mxu0
    %v101 = vunpack.c.l.b16 %v32
    %v102 = vunpack.c.l.b16 %v33
    %v103 = vunpack.c.l.b16 %v34
    %v104 = vunpack.c.l.b16 %v35
    %v105 = vpack.c.b16 %v102, %v101
    %v106 = vpack.c.b16 %v104, %v103
    %v110 = vsel %vm53, %v31, 0
    %112 = vmatprep.subr.bf16.mxu0 0
    %113 = vmatpush1.bf16.msra.mxu0 %v105
    %114 = vmatprep.subr.bf16.mxu0 0
    %115 = vmatpush1.bf16.msra.mxu0 %v106
    %116 = vmatprep.subr.bf16.mxu0 0
    %117 = vmatpush1.bf16.msra.mxu0 0
    %118 = vmatprep.subr.bf16.mxu0 0
    %119 = vmatpush1.bf16.msra.mxu0 0
    %120 = vmatprep.subr.bf16.mxu0 0
    %121 = vmatpush1.bf16.msra.mxu0 0
    %122 = vmatprep.subr.bf16.mxu0 0
    %123 = vmatpush1.bf16.msra.mxu0 0
    %124 = vmatprep.subr.bf16.mxu0 0
    %125 = vmatpush1.bf16.msra.mxu0 0
    %126 = vmatprep.subr.bf16.mxu0 0
    %127 = vmatpush1.bf16.msra.mxu0 0
    %128 = vmatprep.subr.bf16.mxu0 0
    %129 = vmatpush1.bf16.msra.mxu0 0
    %130 = vmatprep.subr.bf16.mxu0 0
    %131 = vmatpush1.bf16.msra.mxu0 0
    %132 = vmatprep.subr.bf16.mxu0 0
    %133 = vmatpush1.bf16.msra.mxu0 0
    %134 = vmatprep.subr.bf16.mxu0 0
    %135 = vmatpush1.bf16.msra.mxu0 0
    %136 = vmatprep.subr.bf16.mxu0 0
    %137 = vmatpush1.bf16.msra.mxu0 0
    %138 = vmatprep.subr.bf16.mxu0 0
    %139 = vmatpush1.bf16.msra.mxu0 0
    %140 = vmatprep.subr.bf16.mxu0 0
    %141 = vmatpush1.bf16.msra.mxu0 0
    %142 = vmatprep.subr.bf16.mxu0 0
    %143 = vmatpush1.bf16.msra.mxu0 0
    %144 = vmatprep.mubr.bf16.mxu0 0
    %145 = vmatmul.mubr.bf16.gmra.mrb[0].mxu0 %v110
    %v146 = vpop.f32.mrb[0].mxu0
    %v147 = vadd.f32 %v92, %v146
    %v148 = vpop.f32.mrb[0].mxu0
    %v149 = vpop.f32.mrb[0].mxu0
    %v150 = vpop.f32.mrb[0].mxu0
    %151 = vdwg.mxu0
    %v152 = vld [vmem:[%s2] sm:$0x1]
    %v153 = vld [vmem:[%s3 + $0x20] sm:$0xf]
    %v154 = vld [vmem:[%s3 + $0x24] sm:$0xf]
    %v155 = vld [vmem:[%s3 + $0x28] sm:$0xf]
    %v156 = vld [vmem:[%s3 + $0x2c] sm:$0xf]
    %v161 = vunpack.c.l.b16 %v153
    %v162 = vunpack.c.l.b16 %v154
    %v163 = vunpack.c.l.b16 %v155
    %v164 = vunpack.c.l.b16 %v156
    %v165 = vpack.c.b16 %v162, %v161
    %v166 = vpack.c.b16 %v164, %v163
    %v170 = vsel %vm53, %v152, 0
    %172 = vmatprep.subr.bf16.mxu0 0
    %173 = vmatpush1.bf16.msra.mxu0 %v165
    %174 = vmatprep.subr.bf16.mxu0 0
    %175 = vmatpush1.bf16.msra.mxu0 %v166
    %176 = vmatprep.subr.bf16.mxu0 0
    %177 = vmatpush1.bf16.msra.mxu0 0
    %178 = vmatprep.subr.bf16.mxu0 0
    %179 = vmatpush1.bf16.msra.mxu0 0
    %180 = vmatprep.subr.bf16.mxu0 0
    %181 = vmatpush1.bf16.msra.mxu0 0
    %182 = vmatprep.subr.bf16.mxu0 0
    %183 = vmatpush1.bf16.msra.mxu0 0
    %184 = vmatprep.subr.bf16.mxu0 0
    %185 = vmatpush1.bf16.msra.mxu0 0
    %186 = vmatprep.subr.bf16.mxu0 0
    %187 = vmatpush1.bf16.msra.mxu0 0
    %188 = vmatprep.subr.bf16.mxu0 0
    %189 = vmatpush1.bf16.msra.mxu0 0
    %190 = vmatprep.subr.bf16.mxu0 0
    %191 = vmatpush1.bf16.msra.mxu0 0
    %192 = vmatprep.subr.bf16.mxu0 0
    %193 = vmatpush1.bf16.msra.mxu0 0
    %194 = vmatprep.subr.bf16.mxu0 0
    %195 = vmatpush1.bf16.msra.mxu0 0
    %196 = vmatprep.subr.bf16.mxu0 0
    %197 = vmatpush1.bf16.msra.mxu0 0
    %198 = vmatprep.subr.bf16.mxu0 0
    %199 = vmatpush1.bf16.msra.mxu0 0
    %200 = vmatprep.subr.bf16.mxu0 0
    %201 = vmatpush1.bf16.msra.mxu0 0
    %202 = vmatprep.subr.bf16.mxu0 0
    %203 = vmatpush1.bf16.msra.mxu0 0
    %204 = vmatprep.mubr.bf16.mxu0 0
    %205 = vmatmul.mubr.bf16.gmra.mrb[0].mxu0 %v170
    %v206 = vpop.f32.mrb[0].mxu0
    %v207 = vadd.f32 0.0, %v206
    %v208 = vpop.f32.mrb[0].mxu0
    %v209 = vpop.f32.mrb[0].mxu0
    %v210 = vpop.f32.mrb[0].mxu0
    %211 = vdwg.mxu0
    %v212 = vadd.f32 %v147, %v207
    %v213 = vld [vmem:[%s4] sm:$0x1]
    %v215 = vlaneseq
    %v216 = vshrl.u32 %v215, 7
    %v217 = vsub.s32 0, %v216
    %v218 = vrot.slane %v213, %v217
    %v220 = vadd.f32 %v212, %v218
    %vm221 = vcmask 254976
    %v222 = vsel %vm221, %v220, 0.0
    %223 = vadd.xlane.f32.xlu0 %v222
    %v224 = vpop.xlane.xlu0 %223
    %v225 = vmul.f32 %v224, 0.03125
    %v226 = vmul.f32 %v220, %v220
    %v227 = vsel %vm221, %v226, 0.0
    %228 = vadd.xlane.f32.xlu0 %v227
    %v229 = vpop.xlane.xlu0 %228
    %v230 = vmul.f32 %v229, 0.03125
    %v231 = vmul.f32 %v225, %v225
    %v232 = vsub.f32 %v230, %v231
    %v233 = vsub.f32 %v220, %v225
    %v234 = vadd.f32 %v232, 1e-05
    %v235 = vrsqrt.pop %v234
    %v236 = vmul.f32 %v233, %v235
    %v237 = vld [vmem:[%s5] sm:$0x1]
    %v239 = vlaneseq
    %v240 = vshrl.u32 %v239, 7
    %v241 = vsub.s32 0, %v240
    %v242 = vrot.slane %v237, %v241
    %v244 = vmul.f32 %v236, %v242
    %v245 = vld [vmem:[%s6] sm:$0x1]
    %v247 = vlaneseq
    %v248 = vshrl.u32 %v247, 7
    %v249 = vsub.s32 0, %v248
    %v250 = vrot.slane %v245, %v249
    %v252 = vadd.f32 %v244, %v250
    %v253 = vpack.c.bf16 %v252, %v252
    %v254 = vld [vmem:[%s7] sm:$0xf]
    %v255 = vld [vmem:[%s7 + $0x4] sm:$0xf]
    %v256 = vld [vmem:[%s7 + $0x8] sm:$0xf]
    %v257 = vld [vmem:[%s7 + $0xc] sm:$0xf]
    %v258 = vld [vmem:[%s7 + $0x10] sm:$0xf]
    %v259 = vld [vmem:[%s7 + $0x14] sm:$0xf]
    %v260 = vld [vmem:[%s7 + $0x18] sm:$0x3]
    %v268 = vunpack.c.l.b16 %v254
    %v269 = vunpack.c.l.b16 %v255
    %v270 = vunpack.c.l.b16 %v256
    %v271 = vunpack.c.l.b16 %v257
    %v272 = vunpack.c.l.b16 %v258
    %v273 = vunpack.c.l.b16 %v259
    %v274 = vunpack.c.l.b16 %v260
    %v275 = vpack.c.b16 %v269, %v268
    %v276 = vpack.c.b16 %v271, %v270
    %v277 = vpack.c.b16 %v273, %v272
    %v278 = vpack.c.b16 %v274, %v274
    %v280 = vsel %vm53, %v253, 0
    %v283 = vsel %vm53, %v275, 0
    %v286 = vsel %vm53, %v276, 0
    %v289 = vsel %vm53, %v277, 0
    %v292 = vsel %vm53, %v278, 0
    %294 = vmatprep.subr.bf16.mxu0 0
    %295 = vmatpush1.bf16.xpose.msra.mxu0 %v283
    %296 = vmatprep.subr.bf16.mxu0 0
    %297 = vmatpush1.bf16.xpose.msra.mxu0 %v286
    %298 = vmatprep.subr.bf16.mxu0 0
    %299 = vmatpush1.bf16.xpose.msra.mxu0 %v289
    %300 = vmatprep.subr.bf16.mxu0 0
    %301 = vmatpush1.bf16.xpose.msra.mxu0 %v292
    %302 = vmatprep.subr.bf16.mxu0 0
    %303 = vmatpush1.bf16.xpose.msra.mxu0 0
    %304 = vmatprep.subr.bf16.mxu0 0
    %305 = vmatpush1.bf16.xpose.msra.mxu0 0
    %306 = vmatprep.subr.bf16.mxu0 0
    %307 = vmatpush1.bf16.xpose.msra.mxu0 0
    %308 = vmatprep.subr.bf16.mxu0 0
    %309 = vmatpush1.bf16.xpose.msra.mxu0 0
    %310 = vmatprep.subr.bf16.mxu0 0
    %311 = vmatpush1.bf16.xpose.msra.mxu0 0
    %312 = vmatprep.subr.bf16.mxu0 0
    %313 = vmatpush1.bf16.xpose.msra.mxu0 0
    %314 = vmatprep.subr.bf16.mxu0 0
    %315 = vmatpush1.bf16.xpose.msra.mxu0 0
    %316 = vmatprep.subr.bf16.mxu0 0
    %317 = vmatpush1.bf16.xpose.msra.mxu0 0
    %318 = vmatprep.subr.bf16.mxu0 0
    %319 = vmatpush1.bf16.xpose.msra.mxu0 0
    %320 = vmatprep.subr.bf16.mxu0 0
    %321 = vmatpush1.bf16.xpose.msra.mxu0 0
    %322 = vmatprep.subr.bf16.mxu0 0
    %323 = vmatpush1.bf16.xpose.msra.mxu0 0
    %324 = vmatprep.subr.bf16.mxu0 0
    %325 = vmatpush1.bf16.xpose.msra.mxu0 0
    %326 = vmatprep.mubr.bf16.mxu0 0
    %327 = vmatmul.mubr.bf16.gmra.mrb[0].mxu0 %v280
    %v328 = vpop.f32.mrb[0].mxu0
    %v329 = vadd.f32 0.0, %v328
    %v330 = vpop.f32.mrb[0].mxu0
    %v331 = vpop.f32.mrb[0].mxu0
    %v332 = vpop.f32.mrb[0].mxu0
    %333 = vdwg.mxu0
    %v334 = vpack.c.bf16 %v329, %v329
    %vm335 = vcmask 409600
    %336 = vst.msk [vmem:[#allocation2] sm:$0x1] %vm335, %v334
    // Predicated region
    $region34: #{moca_forward.1} parent=1 // pred_check
      _
    $region35: #{moca_forward.1} parent=1 // pred_check_branch
      %338 = sbr.rel (0) target = $region37
    $region36: #{moca_forward.1} parent=1 // pred_region
      %s340 = ssub.s32 16, 16
      %341 = vsyncadd [#allocation3], %s340
      %s343 = sshll.u32 [#allocation2], 4
      %s344 = int_to_ptr.vmem [resolvable:$true] %s343
      %346 = dma.vmem_to_hbm [thread:$0]  %s344, 16, %s8, [#allocation3]
    $region37: #{moca_forward.1} parent=1 // pred_fallthru
      _
    // Predicated region
    $region38: #{moca_forward.1} parent=1 // pred_check
      _
    $region39: #{moca_forward.1} parent=1 // pred_check_branch
      %348 = sbr.rel (0) target = $region41
    $region40: #{moca_forward.1} parent=1 // pred_region
      %349 = dma.done [#allocation3], 16
    $region41: #{moca_forward.1} parent=1 // pred_fallthru
      _
    %350 = vsyncpa [#allocation3], 1

</llo_original>
